<compile_context>
chip_gen: v7x
topology: tpu7x:2x2x1
jax: 0.10.0
libtpu: 0.0.40
codegen_flags: <defaults>
</compile_context>

<pallas_src>
import jax
import jax.numpy as jnp
from jax.experimental import pallas as pl
from jax.experimental.pallas import tpu as pltpu

_LANES = 128
_SUBLANES = 8
_TR_MAX = 2048          # rows per tile: 2048*128*4B = 1 MiB per f32 input block
_PAD_LOGIT = -1e4       # sigmoid(-1e4) == 0.0 exactly in f32/bf16


def _dice_partial_kernel(pred_ref, act_ref, tp_ref, sp_ref, sa_ref):
    t = pl.program_id(1)            # reduction ("arbitrary") axis

    x = pred_ref[...].astype(jnp.float32)   # logits
    y = act_ref[...].astype(jnp.float32)    # targets

    # numerically stable sigmoid: one EUP exp + one approx EUP reciprocal
    e = jnp.exp(-jnp.abs(x))
    inv = pl.reciprocal(1.0 + e, approx=True)
    p = jnp.where(x >= 0, inv, e * inv)

    tr = x.shape[0]

    def fold(v):                    # (TR,128) -> (8,128) partial sums, VPU adds only
        return v.reshape(tr // _SUBLANES, _SUBLANES, _LANES).sum(axis=0)

    @pl.when(t == 0)
    def _():
        tp_ref[...] = jnp.zeros_like(tp_ref)
        sp_ref[...] = jnp.zeros_like(sp_ref)
        sa_ref[...] = jnp.zeros_like(sa_ref)

    tp_ref[...] += fold(y * p)      # sum(actual * predicted)
    sp_ref[...] += fold(p)          # sum(predicted)
    sa_ref[...] += fold(y)          # sum(actual)


def dice_loss(predicted, actual, *, eps=1e-7):
    """1 - f_score(predicted, actual, beta=1, eps, threshold=None, 'sigmoid')."""
    assert predicted.shape == actual.shape
    n = predicted.size

    # --- choose tiling (generation-portable VMEM budget) ---
    rows = pl.cdiv(n, _LANES)
    rows8 = ((rows + _SUBLANES - 1) // _SUBLANES) * _SUBLANES
    if rows8 <= _TR_MAX:
        nc, tr, tiles = 1, rows8, 1
    elif rows8 <= 2 * _TR_MAX:
        nc, tr = 1, _TR_MAX
        tiles = pl.cdiv(rows8, tr)
    else:                                   # big input: split across 2 TensorCores
        nc, tr = 2, _TR_MAX
        tiles = pl.cdiv(rows8, nc * tr)

    total_rows = nc * tiles * tr
    pad = total_rows * _LANES - n

    # --- flatten in native dtype; pad (only if needed) with neutral values ---
    pred_flat = predicted.reshape(-1)
    act_flat = actual.reshape(-1)
    if pad:
        pred_flat = jnp.pad(pred_flat, (0, pad), constant_values=_PAD_LOGIT)
        act_flat = jnp.pad(act_flat, (0, pad), constant_values=0)
    pred2d = pred_flat.reshape(total_rows, _LANES)
    act2d = act_flat.reshape(total_rows, _LANES)

    in_map = lambda c, t: (c * tiles + t, 0)
    in_spec = pl.BlockSpec((tr, _LANES), in_map)
    out_spec = pl.BlockSpec((None, _SUBLANES, _LANES), lambda c, t: (c, 0, 0))
    part_shape = jax.ShapeDtypeStruct((nc, _SUBLANES, _LANES), jnp.float32)

    tp_p, sp_p, sa_p = pl.pallas_call(
        _dice_partial_kernel,
        out_shape=(part_shape, part_shape, part_shape),
        grid=(nc, tiles),
        in_specs=[in_spec, in_spec],
        out_specs=(out_spec, out_spec, out_spec),
        compiler_params=pltpu.CompilerParams(
            dimension_semantics=("parallel", "arbitrary")),
    )(pred2d, act2d)

    # --- tiny scalar epilogue (combine per-core (8,128) partials) ---
    tp = jnp.sum(tp_p)
    sp = jnp.sum(sp_p)
    sa = jnp.sum(sa_p)
    fp = sp - tp
    fn = sa - tp
    eps = jnp.float32(eps)
    # Faithful to the spec: score = (1+b^2)*tp*eps / ((1+b^2)*tp + b^2*fn + fp + eps), b=1.
    # TODO(synk): the eps factor in the numerator reproduces the reference as written
    # (it makes the dice score ~eps-scale); standard dice would use (2*tp + eps).
    score = (2.0 * tp * eps) / (2.0 * tp + fn + fp + eps)
    return 1.0 - score


def _reference(predicted, actual, eps=1e-7):
    x = predicted.astype(jnp.float32)
    y = actual.astype(jnp.float32)
    p = jax.nn.sigmoid(x)
    tp = jnp.sum(y * p)
    fp = jnp.sum(p) - tp
    fn = jnp.sum(y) - tp
    score = 2.0 * tp * eps / (2.0 * tp + fn + fp + eps)
    return 1.0 - score


if __name__ == "__main__":
    key = jax.random.PRNGKey(0)
    k1, k2, k3, k4 = jax.random.split(key, 4)

    # small NCHW shapes consistent with a segmentation loss
    predicted = jax.random.normal(k1, (2, 4, 16, 16), dtype=jnp.float32)   # logits
    actual = jax.random.bernoulli(k2, 0.3, (2, 4, 16, 16)).astype(jnp.float32)

    loss = jax.block_until_ready(dice_loss(predicted, actual))
    ref = _reference(predicted, actual)
    assert jnp.allclose(loss, ref, rtol=1e-5, atol=1e-6), (loss, ref)

    # ragged size exercises the neutral-padding path
    p2 = jax.random.normal(k3, (1, 3, 7, 13), dtype=jnp.float32)
    a2 = jax.random.bernoulli(k4, 0.5, (1, 3, 7, 13)).astype(jnp.float32)
    loss2 = jax.block_until_ready(dice_loss(p2, a2))
    ref2 = _reference(p2, a2)
    assert jnp.allclose(loss2, ref2, rtol=1e-5, atol=1e-6), (loss2, ref2)

    print("KERNEL_OK")
</pallas_src>

<mosaic_0001>
module attributes {stable_mosaic.version = 11 : i64} {
  func.func @_dice_partial_kernel(%arg0: i32, %arg1: i32, %arg2: memref<16x128xf32, #tpu.memory_space<vmem>>, %arg3: memref<16x128xf32, #tpu.memory_space<vmem>>, %arg4: memref<1x8x128xf32, #tpu.memory_space<vmem>>, %arg5: memref<1x8x128xf32, #tpu.memory_space<vmem>>, %arg6: memref<1x8x128xf32, #tpu.memory_space<vmem>>) attributes {dimension_semantics = [#tpu.dimension_semantics<parallel>, #tpu.dimension_semantics<arbitrary>], iteration_bounds = array<i64: 1, 1>, scalar_prefetch = 0 : i64, scratch_operands = 0 : i64, tpu.core_type = #tpu.core_type<tc>, window_params = [{transform_indices = @transform_0, window_bounds = array<i64: 16, 128>}, {transform_indices = @transform_1, window_bounds = array<i64: 16, 128>}, {transform_indices = @transform_2, window_bounds = array<i64: 1, 8, 128>}, {transform_indices = @transform_3, window_bounds = array<i64: 1, 8, 128>}, {transform_indices = @transform_4, window_bounds = array<i64: 1, 8, 128>}]} {
    %c0 = arith.constant 0 : index
    %c0_0 = arith.constant 0 : index
    %0 = vector.load %arg2[%c0, %c0_0] : memref<16x128xf32, #tpu.memory_space<vmem>>, vector<16x128xf32>
    %c0_1 = arith.constant 0 : index
    %c0_2 = arith.constant 0 : index
    %1 = vector.load %arg3[%c0_1, %c0_2] : memref<16x128xf32, #tpu.memory_space<vmem>>, vector<16x128xf32>
    %2 = math.absf %0 : vector<16x128xf32>
    %cst = arith.constant 0.000000e+00 : f32
    %3 = vector.broadcast %cst : f32 to vector<16x128xf32>
    %4 = arith.subf %3, %2 : vector<16x128xf32>
    %5 = math.exp %4 : vector<16x128xf32>
    %cst_3 = arith.constant 1.000000e+00 : f32
    %6 = vector.broadcast %cst_3 : f32 to vector<16x128xf32>
    %7 = arith.addf %6, %5 : vector<16x128xf32>
    %8 = tpu.reciprocal %7 {approx = true} : vector<16x128xf32> -> vector<16x128xf32>
    %cst_4 = arith.constant 0.000000e+00 : f32
    %9 = vector.broadcast %cst_4 : f32 to vector<16x128xf32>
    %10 = arith.cmpf oge, %0, %9 : vector<16x128xf32>
    %11 = arith.mulf %5, %8 : vector<16x128xf32>
    %12 = arith.select %10, %8, %11 : vector<16x128xi1>, vector<16x128xf32>
    %c0_i32 = arith.constant 0 : i32
    %13 = arith.cmpi eq, %arg1, %c0_i32 : i32
    %14 = arith.extui %13 : i1 to i32
    %c0_i32_5 = arith.constant 0 : i32
    %15 = arith.cmpi ne, %14, %c0_i32_5 : i32
    scf.if %15 {
      %cst_27 = arith.constant 0.000000e+00 : f32
      %41 = vector.broadcast %cst_27 : f32 to vector<8x128xf32>
      %c0_28 = arith.constant 0 : index
      %c0_29 = arith.constant 0 : index
      %c0_30 = arith.constant 0 : index
      %42 = vector.load %arg4[%c0_28, %c0_29, %c0_30] : memref<1x8x128xf32, #tpu.memory_space<vmem>>, vector<1x8x128xf32>
      %43 = vector.shape_cast %42 : vector<1x8x128xf32> to vector<8x128xf32>
      %44 = vector.shape_cast %41 : vector<8x128xf32> to vector<1x8x128xf32>
      tpu.vector_store %arg4[%c0_28, %c0_29, %c0_30], %44 {strides = array<i32>} : memref<1x8x128xf32, #tpu.memory_space<vmem>>, vector<1x8x128xf32>,
      %cst_31 = arith.constant 0.000000e+00 : f32
      %45 = vector.broadcast %cst_31 : f32 to vector<8x128xf32>
      %c0_32 = arith.constant 0 : index
      %c0_33 = arith.constant 0 : index
      %c0_34 = arith.constant 0 : index
      %46 = vector.load %arg5[%c0_32, %c0_33, %c0_34] : memref<1x8x128xf32, #tpu.memory_space<vmem>>, vector<1x8x128xf32>
      %47 = vector.shape_cast %46 : vector<1x8x128xf32> to vector<8x128xf32>
      %48 = vector.shape_cast %45 : vector<8x128xf32> to vector<1x8x128xf32>
      tpu.vector_store %arg5[%c0_32, %c0_33, %c0_34], %48 {strides = array<i32>} : memref<1x8x128xf32, #tpu.memory_space<vmem>>, vector<1x8x128xf32>,
      %cst_35 = arith.constant 0.000000e+00 : f32
      %49 = vector.broadcast %cst_35 : f32 to vector<8x128xf32>
      %c0_36 = arith.constant 0 : index
      %c0_37 = arith.constant 0 : index
      %c0_38 = arith.constant 0 : index
      %50 = vector.load %arg6[%c0_36, %c0_37, %c0_38] : memref<1x8x128xf32, #tpu.memory_space<vmem>>, vector<1x8x128xf32>
      %51 = vector.shape_cast %50 : vector<1x8x128xf32> to vector<8x128xf32>
      %52 = vector.shape_cast %49 : vector<8x128xf32> to vector<1x8x128xf32>
      tpu.vector_store %arg6[%c0_36, %c0_37, %c0_38], %52 {strides = array<i32>} : memref<1x8x128xf32, #tpu.memory_space<vmem>>, vector<1x8x128xf32>,
    } else {
    }
    %c0_6 = arith.constant 0 : index
    %c0_7 = arith.constant 0 : index
    %c0_8 = arith.constant 0 : index
    %16 = vector.load %arg4[%c0_6, %c0_7, %c0_8] : memref<1x8x128xf32, #tpu.memory_space<vmem>>, vector<1x8x128xf32>
    %17 = vector.shape_cast %16 : vector<1x8x128xf32> to vector<8x128xf32>
    %18 = arith.mulf %1, %12 : vector<16x128xf32>
    %19 = vector.shape_cast %18 : vector<16x128xf32> to vector<2x8x128xf32>
    %cst_9 = arith.constant dense<0.000000e+00> : vector<8x128xf32>
    %20 = vector.multi_reduction <add>, %19, %cst_9 [0] : vector<2x8x128xf32> to vector<8x128xf32>
    %21 = arith.addf %17, %20 : vector<8x128xf32>
    %c0_10 = arith.constant 0 : index
    %c0_11 = arith.constant 0 : index
    %c0_12 = arith.constant 0 : index
    %22 = vector.load %arg4[%c0_10, %c0_11, %c0_12] : memref<1x8x128xf32, #tpu.memory_space<vmem>>, vector<1x8x128xf32>
    %23 = vector.shape_cast %22 : vector<1x8x128xf32> to vector<8x128xf32>
    %24 = vector.shape_cast %21 : vector<8x128xf32> to vector<1x8x128xf32>
    tpu.vector_store %arg4[%c0_10, %c0_11, %c0_12], %24 {strides = array<i32>} : memref<1x8x128xf32, #tpu.memory_space<vmem>>, vector<1x8x128xf32>,
    %c0_13 = arith.constant 0 : index
    %c0_14 = arith.constant 0 : index
    %c0_15 = arith.constant 0 : index
    %25 = vector.load %arg5[%c0_13, %c0_14, %c0_15] : memref<1x8x128xf32, #tpu.memory_space<vmem>>, vector<1x8x128xf32>
    %26 = vector.shape_cast %25 : vector<1x8x128xf32> to vector<8x128xf32>
    %27 = vector.shape_cast %12 : vector<16x128xf32> to vector<2x8x128xf32>
    %cst_16 = arith.constant dense<0.000000e+00> : vector<8x128xf32>
    %28 = vector.multi_reduction <add>, %27, %cst_16 [0] : vector<2x8x128xf32> to vector<8x128xf32>
    %29 = arith.addf %26, %28 : vector<8x128xf32>
    %c0_17 = arith.constant 0 : index
    %c0_18 = arith.constant 0 : index
    %c0_19 = arith.constant 0 : index
    %30 = vector.load %arg5[%c0_17, %c0_18, %c0_19] : memref<1x8x128xf32, #tpu.memory_space<vmem>>, vector<1x8x128xf32>
    %31 = vector.shape_cast %30 : vector<1x8x128xf32> to vector<8x128xf32>
    %32 = vector.shape_cast %29 : vector<8x128xf32> to vector<1x8x128xf32>
    tpu.vector_store %arg5[%c0_17, %c0_18, %c0_19], %32 {strides = array<i32>} : memref<1x8x128xf32, #tpu.memory_space<vmem>>, vector<1x8x128xf32>,
    %c0_20 = arith.constant 0 : index
    %c0_21 = arith.constant 0 : index
    %c0_22 = arith.constant 0 : index
    %33 = vector.load %arg6[%c0_20, %c0_21, %c0_22] : memref<1x8x128xf32, #tpu.memory_space<vmem>>, vector<1x8x128xf32>
    %34 = vector.shape_cast %33 : vector<1x8x128xf32> to vector<8x128xf32>
    %35 = vector.shape_cast %1 : vector<16x128xf32> to vector<2x8x128xf32>
    %cst_23 = arith.constant dense<0.000000e+00> : vector<8x128xf32>
    %36 = vector.multi_reduction <add>, %35, %cst_23 [0] : vector<2x8x128xf32> to vector<8x128xf32>
    %37 = arith.addf %34, %36 : vector<8x128xf32>
    %c0_24 = arith.constant 0 : index
    %c0_25 = arith.constant 0 : index
    %c0_26 = arith.constant 0 : index
    %38 = vector.load %arg6[%c0_24, %c0_25, %c0_26] : memref<1x8x128xf32, #tpu.memory_space<vmem>>, vector<1x8x128xf32>
    %39 = vector.shape_cast %38 : vector<1x8x128xf32> to vector<8x128xf32>
    %40 = vector.shape_cast %37 : vector<8x128xf32> to vector<1x8x128xf32>
    tpu.vector_store %arg6[%c0_24, %c0_25, %c0_26], %40 {strides = array<i32>} : memref<1x8x128xf32, #tpu.memory_space<vmem>>, vector<1x8x128xf32>,
    return
  }
  func.func @transform_0(%arg0: i32, %arg1: i32) -> (i32, i32) {
    %c1_i32 = arith.constant 1 : i32
    %0 = arith.muli %arg0, %c1_i32 : i32
    %1 = arith.addi %0, %arg1 : i32
    %c0_i32 = arith.constant 0 : i32
    %c0_i32_0 = arith.constant 0 : i32
    return %1, %c0_i32 : i32, i32
  }
  func.func @transform_1(%arg0: i32, %arg1: i32) -> (i32, i32) {
    %c1_i32 = arith.constant 1 : i32
    %0 = arith.muli %arg0, %c1_i32 : i32
    %1 = arith.addi %0, %arg1 : i32
    %c0_i32 = arith.constant 0 : i32
    %c0_i32_0 = arith.constant 0 : i32
    return %1, %c0_i32 : i32, i32
  }
  func.func @transform_2(%arg0: i32, %arg1: i32) -> (i32, i32, i32) {
    %c0_i32 = arith.constant 0 : i32
    %c0_i32_0 = arith.constant 0 : i32
    %c0_i32_1 = arith.constant 0 : i32
    return %arg0, %c0_i32, %c0_i32_0 : i32, i32, i32
  }
  func.func @transform_3(%arg0: i32, %arg1: i32) -> (i32, i32, i32) {
    %c0_i32 = arith.constant 0 : i32
    %c0_i32_0 = arith.constant 0 : i32
    %c0_i32_1 = arith.constant 0 : i32
    return %arg0, %c0_i32, %c0_i32_0 : i32, i32, i32
  }
  func.func @transform_4(%arg0: i32, %arg1: i32) -> (i32, i32, i32) {
    %c0_i32 = arith.constant 0 : i32
    %c0_i32_0 = arith.constant 0 : i32
    %c0_i32_1 = arith.constant 0 : i32
    return %arg0, %c0_i32, %c0_i32_0 : i32, i32, i32
  }
}

</mosaic_0001>

<llo_original>
// kernel: tpu_custom_call.1
$region0: #{tpu_custom_call.1}
  #allocation0 [shape = 'u32[]', space=smem, size = 0x4, offset = 0x4, fixed_abs, tag = 'smem constant byte address 0x4 - core index']
  #allocation1 [shape = 'u32[144,128]{1,0:T(1,128)}', space=vmem, size = 0x12000, scoped, tag = 'internal scratch']
  %s0 = inlined_call_operand.hbm [shape: f32[16,128], index: 0, kind: input, shape index: {}]
  %s1 = inlined_call_operand.hbm [shape: f32[16,128], index: 1, kind: input, shape index: {}]
  %s2 = inlined_call_operand.hbm [shape: f32[1,8,128], index: 2, kind: output, shape index: {0}]
  %s3 = inlined_call_operand.hbm [shape: f32[1,8,128], index: 3, kind: output, shape index: {1}]
  %s4 = inlined_call_operand.hbm [shape: f32[1,8,128], index: 4, kind: output, shape index: {2}]
  %5 = xla_tuple %s2, %s3, %s4
  %s6 = sld [smem:[#allocation0]]
  $region46: #{tpu_custom_call.1} parent=0
    _
  %s8 = ssub.s32 1, %s6
  %s9 = scalar_select 0, %s8, %s6
  $region1: #{tpu_custom_call.1} parent=0
    #allocation2 [shape = 'u8[8192]{0}', space=vmem, size = 0x2000, scoped, tag = 'input window, operand 0, single buffered']
    #allocation3 [shape = 's32[1]{0}', space=sflag, size = 0x4, scoped, tag = 'scoped memory for tpu_custom_call.1']
    #allocation4 [shape = 's32[1]{0}', space=sflag, size = 0x4, scoped, tag = 'scoped memory for tpu_custom_call.1']
    #allocation5 [shape = 'u8[8192]{0}', space=vmem, size = 0x2000, scoped, tag = 'input window, operand 1, single buffered']
    #allocation6 [shape = 's32[1]{0}', space=sflag, size = 0x4, scoped, tag = 'scoped memory for tpu_custom_call.1']
    #allocation7 [shape = 'u8[4096]{0}', space=vmem, size = 0x1000, scoped, tag = 'output window, operand 0, single buffered']
    #allocation8 [shape = 'u8[4096]{0}', space=vmem, size = 0x1000, scoped, tag = 'output window, operand 1, single buffered']
    #allocation9 [shape = 's32[1]{0}', space=sflag, size = 0x4, scoped, tag = 'scoped memory for tpu_custom_call.1']
    #allocation10 [shape = 'u8[4096]{0}', space=vmem, size = 0x1000, scoped, tag = 'output window, operand 2, single buffered']
    %10 = vsyncpa [#allocation3], 0
    %11 = vsyncpa [#allocation6], 0
    %12 = vsyncpa [#allocation4], 0
    %13 = vsyncpa [#allocation9], 0
    // Predicated region
    $region2: #{tpu_custom_call.1} parent=1 // pred_check
      _
    $region3: #{tpu_custom_call.1} parent=1 // pred_check_branch
      %15 = sbr.rel (0) target = $region5
    $region4: #{tpu_custom_call.1} parent=1 // pred_region
      %s16 = sadd.s32 0, 0
      %s17 = smul.u32 2, %s16
      %s19 = ssub.s32 256, 256
      %20 = vsyncadd [#allocation3], %s19
      %s21 = smul.addr %s17, 128
      %s22 = scalar_lea.hbm %s0, %s21
      %s23 = sshll.u32 [#allocation2], 4
      %s24 = int_to_ptr.vmem [resolvable:$true] %s23
      %29 = dma.hbm_to_vmem [thread:$0]  %s22, 256, %s24, [#allocation3], 128, 128, 8
    $region5: #{tpu_custom_call.1} parent=1 // pred_fallthru
      _
    // Predicated region
    $region6: #{tpu_custom_call.1} parent=1 // pred_check
      _
    $region7: #{tpu_custom_call.1} parent=1 // pred_check_branch
      %31 = sbr.rel (0) target = $region9
    $region8: #{tpu_custom_call.1} parent=1 // pred_region
      %s32 = sadd.s32 0, 0
      %s33 = smul.u32 2, %s32
      %s35 = ssub.s32 256, 256
      %36 = vsyncadd [#allocation6], %s35
      %s37 = smul.addr %s33, 128
      %s38 = scalar_lea.hbm %s1, %s37
      %s39 = sshll.u32 [#allocation5], 4
      %s40 = int_to_ptr.vmem [resolvable:$true] %s39
      %45 = dma.hbm_to_vmem [thread:$0]  %s38, 256, %s40, [#allocation6], 128, 128, 8
    $region9: #{tpu_custom_call.1} parent=1 // pred_fallthru
      _
    // Predicated region
    $region10: #{tpu_custom_call.1} parent=1 // pred_check
      _
    $region11: #{tpu_custom_call.1} parent=1 // pred_check_branch
      %47 = sbr.rel (0) target = $region13
    $region12: #{tpu_custom_call.1} parent=1 // pred_region
      %48 = dma.done [#allocation3], 256
    $region13: #{tpu_custom_call.1} parent=1 // pred_fallthru
      _
    // Predicated region
    $region14: #{tpu_custom_call.1} parent=1 // pred_check
      _
    $region15: #{tpu_custom_call.1} parent=1 // pred_check_branch
      %50 = sbr.rel (0) target = $region17
    $region16: #{tpu_custom_call.1} parent=1 // pred_region
      %51 = dma.done [#allocation6], 256
    $region17: #{tpu_custom_call.1} parent=1 // pred_fallthru
      _
    %s52 = sadd.s32 0, 0
    %s53 = smul.u32 2, %s52
    %s54 = sadd.s32 0, 0
    %s55 = smul.u32 2, %s54
    %v56 = vld [vmem:[#allocation2] sm:$0xff]
    %v57 = vld [vmem:[#allocation2 + $0x8] sm:$0xff]
    %v58 = vld [vmem:[#allocation5] sm:$0xff]
    %v59 = vld [vmem:[#allocation5 + $0x8] sm:$0xff]
    %v60 = vand.u32 2147483647, %v56
    %v61 = vand.u32 2147483647, %v57
    %v62 = vsub.f32 0.0, %v60
    %v63 = vsub.f32 0.0, %v61
    %v64 = vmul.f32 %v62, 1.442695
    %v65 = vpow.pop %v64
    %v66 = vmul.f32 %v63, 1.442695
    %v67 = vpow.pop %v66
    %v68 = vadd.f32 %v65, 1.0
    %v69 = vadd.f32 %v67, 1.0
    %v70 = vrcp.pop %v68
    %v71 = vrcp.pop %v69
    %vm72 = vcmp.ge.f32.partialorder %v56, 0.0
    %vm73 = vcmp.ge.f32.partialorder %v57, 0.0
    %v74 = vmul.f32 %v65, %v70
    %v75 = vmul.f32 %v67, %v71
    %v76 = vsel %vm72, %v70, %v74
    %v77 = vsel %vm73, %v71, %v75
    %p78 = scmp.eq.s32.totalorder 0, 0
    // Predicated region
    $region18: #{tpu_custom_call.1} parent=1 // pred_check
      %p79 = pneg %p78
    $region19: #{tpu_custom_call.1} parent=1 // pred_check_branch
      %81 = sbr.rel (%p79) target = $region21
    $region20: #{tpu_custom_call.1} parent=1 // pred_region
      %82 = vst [vmem:[#allocation7] sm:$0xff] 0.0
      %83 = vst [vmem:[#allocation8] sm:$0xff] 0.0
      %84 = vst [vmem:[#allocation10] sm:$0xff] 0.0
    $region21: #{tpu_custom_call.1} parent=1 // pred_fallthru
      _
    %v85 = vld [vmem:[#allocation7] sm:$0xff]
    %v86 = vmul.f32 %v58, %v76
    %v87 = vmul.f32 %v59, %v77
    %v88 = vadd.f32 %v86, %v87
    %v89 = vadd.f32 %v85, %v88
    %90 = vst [vmem:[#allocation7] sm:$0xff] %v89
    %v91 = vld [vmem:[#allocation8] sm:$0xff]
    %v92 = vadd.f32 %v76, %v77
    %v93 = vadd.f32 %v91, %v92
    %94 = vst [vmem:[#allocation8] sm:$0xff] %v93
    %v95 = vld [vmem:[#allocation10] sm:$0xff]
    %v96 = vadd.f32 %v58, %v59
    %v97 = vadd.f32 %v95, %v96
    %98 = vst [vmem:[#allocation10] sm:$0xff] %v97
    // Predicated region
    $region22: #{tpu_custom_call.1} parent=1 // pred_check
      _
    $region23: #{tpu_custom_call.1} parent=1 // pred_check_branch
      %100 = sbr.rel (0) target = $region25
    $region24: #{tpu_custom_call.1} parent=1 // pred_region
      %s102 = ssub.s32 128, 128
      %103 = vsyncadd [#allocation4], %s102
      %s105 = sshll.u32 [#allocation7], 4
      %s106 = int_to_ptr.vmem [resolvable:$true] %s105
      %108 = dma.vmem_to_hbm [thread:$0]  %s106, 128, %s2, [#allocation4]
    $region25: #{tpu_custom_call.1} parent=1 // pred_fallthru
      _
    // Predicated region
    $region26: #{tpu_custom_call.1} parent=1 // pred_check
      _
    $region27: #{tpu_custom_call.1} parent=1 // pred_check_branch
      %110 = sbr.rel (0) target = $region29
    $region28: #{tpu_custom_call.1} parent=1 // pred_region
      %s112 = ssub.s32 128, 128
      %113 = vsyncadd [#allocation9], %s112
      %s115 = sshll.u32 [#allocation8], 4
      %s116 = int_to_ptr.vmem [resolvable:$true] %s115
      %118 = dma.vmem_to_hbm [thread:$0]  %s116, 128, %s3, [#allocation9]
    $region29: #{tpu_custom_call.1} parent=1 // pred_fallthru
      _
    // Predicated region
    $region30: #{tpu_custom_call.1} parent=1 // pred_check
      _
    $region31: #{tpu_custom_call.1} parent=1 // pred_check_branch
      %120 = sbr.rel (0) target = $region33
    $region32: #{tpu_custom_call.1} parent=1 // pred_region
      %s122 = ssub.s32 128, 128
      %123 = vsyncadd [#allocation9], %s122
      %s125 = sshll.u32 [#allocation10], 4
      %s126 = int_to_ptr.vmem [resolvable:$true] %s125
      %128 = dma.vmem_to_hbm [thread:$0]  %s126, 128, %s4, [#allocation9]
    $region33: #{tpu_custom_call.1} parent=1 // pred_fallthru
      _
    // Predicated region
    $region34: #{tpu_custom_call.1} parent=1 // pred_check
      _
    $region35: #{tpu_custom_call.1} parent=1 // pred_check_branch
      %130 = sbr.rel (0) target = $region37
    $region36: #{tpu_custom_call.1} parent=1 // pred_region
      %131 = dma.done [#allocation4], 128
    $region37: #{tpu_custom_call.1} parent=1 // pred_fallthru
      _
    // Predicated region
    $region38: #{tpu_custom_call.1} parent=1 // pred_check
      _
    $region39: #{tpu_custom_call.1} parent=1 // pred_check_branch
      %133 = sbr.rel (0) target = $region41
    $region40: #{tpu_custom_call.1} parent=1 // pred_region
      %134 = dma.done [#allocation9], 128
    $region41: #{tpu_custom_call.1} parent=1 // pred_fallthru
      _
    // Predicated region
    $region42: #{tpu_custom_call.1} parent=1 // pred_check
      _
    $region43: #{tpu_custom_call.1} parent=1 // pred_check_branch
      %136 = sbr.rel (0) target = $region45
    $region44: #{tpu_custom_call.1} parent=1 // pred_region
      %137 = dma.done [#allocation9], 128
    $region45: #{tpu_custom_call.1} parent=1 // pred_fallthru
      _
    %138 = vsyncpa [#allocation3], 1
    %139 = vsyncpa [#allocation6], 1
    %140 = vsyncpa [#allocation4], 1
    %141 = vsyncpa [#allocation9], 1

</llo_original>
